<compile_context>
chip_gen: v5e
topology: v5e:2x2
jax: 0.10.0
libtpu: 0.0.40
codegen_flags: <defaults>
</compile_context>

<pallas_src>
import functools

import jax
import jax.numpy as jnp
import numpy as np
from jax import lax
from jax.experimental import pallas as pl
from jax.experimental.pallas import tpu as pltpu


def _round_up(x, m):
    return ((x + m - 1) // m) * m


def _char_decoder_kernel(ids_ref, emb_gates_ref, whh_ref, b_ref,
                         wout_ref, bout_ref, h0_ref, c0_ref,
                         scores_ref, h_out_ref, c_out_ref,
                         gx_sc, h_all_sc,
                         *, seq_len):
    """Whole-sequence LSTM + fused embedding + deferred projection, one launch.

    Ref shapes (L=seq_len, Bp=padded batch (multiple of 8), H=hidden, G=4H,
    Vr=row-padded vocab, Vp=lane-padded vocab):
      ids_ref       : (L*Bp, 1)  int32   time-major flattened char ids
      emb_gates_ref : (Vr, G)    bf16    emb @ W_ih^T, gate cols [i, f, o, g]
      whh_ref       : (H, G)     bf16    W_hh^T,       gate cols [i, f, o, g]
      b_ref         : (1, G)     f32     b_ih + b_hh (reordered)
      wout_ref      : (H, Vp)    bf16    W_proj^T (lane-padded)
      bout_ref      : (1, Vp)    f32     b_proj   (lane-padded)
      h0_ref/c0_ref : (Bp, H)    f32     initial LSTM state (pad rows zero)
      scores_ref    : (L*Bp, Vp) f32     logits (single lane-dense store)
      h_out_ref/c_out_ref : (Bp, H) f32  final LSTM state
      gx_sc         : (L*Bp, G)  f32     scratch: precomputed input-gate preacts
      h_all_sc      : (L*Bp, H)  f32     scratch: all hidden states
    """
    Bp, H = h0_ref.shape                     # Bp is a multiple of 8 (sublane tile)
    LB, Vr = ids_ref.shape[0], emb_gates_ref.shape[0]

    # --- Fused embedding lookup + input->hidden projection (all timesteps) ---
    # x_t @ W_ih^T == one_hot(id_t) @ (emb @ W_ih^T); the (Vr, 4H) table is
    # precomputed in the wrapper, so a single bf16 MXU call replaces the HBM
    # gather round trip plus the (L*B, E) @ (E, 4H) matmul. Bias added once.
    ids = ids_ref[...]                                            # (L*Bp, 1) i32
    col = lax.broadcasted_iota(jnp.int32, (LB, Vr), 1)
    onehot = jnp.where(col == ids, 1.0, 0.0).astype(jnp.bfloat16)  # (L*Bp, Vr)
    gx_sc[...] = (jnp.dot(onehot, emb_gates_ref[...],
                          preferred_element_type=jnp.float32)
                  + b_ref[...])

    whh = whh_ref[...]                                            # (H, 4H) bf16
    # TODO(synk): hold W_hh^T resident in the MXU across the recurrence with
    # pltpu.matmul_push_rhs / matmul_acc_lhs / matmul_pop (the RHS is identical
    # for every step); kept on jnp.dot for portability of lowering.

    def step(t, carry):
        h_prev, c_prev = carry
        # Bp == 8k, so every per-step slab starts on an (8, 128) tile boundary:
        # tile-aligned loads/stores, no masked partial stores on the chain.
        row = pl.multiple_of(t * Bp, Bp)
        # Only the small recurrent matmul sits on the serial chain.
        gates = (gx_sc[pl.ds(row, Bp), :]
                 + jnp.dot(h_prev.astype(jnp.bfloat16), whh,
                           preferred_element_type=jnp.float32))
        # Gate columns pre-permuted to [i, f, o, g]: one sigmoid over the
        # contiguous first 3H lanes + one tanh over the last H lanes
        # (2 EUP pushes instead of 4). State elementwise math stays f32.
        sig = jax.nn.sigmoid(gates[:, :3 * H])
        g_g = jnp.tanh(gates[:, 3 * H:])
        i_g = sig[:, 0 * H:1 * H]
        f_g = sig[:, 1 * H:2 * H]
        o_g = sig[:, 2 * H:3 * H]
        c_new = f_g * c_prev + i_g * g_g
        h_new = o_g * jnp.tanh(c_new)
        h_all_sc[pl.ds(row, Bp), :] = h_new      # tile-aligned store (pad rows
        return (h_new, c_new)                    # written too -> never stale)

    h_fin, c_fin = lax.fori_loop(0, seq_len, step,
                                 (h0_ref[...], c0_ref[...]), unroll=True)

    # Final state written exactly once.
    h_out_ref[...] = h_fin
    c_out_ref[...] = c_fin

    # --- Deferred output projection: one bf16 MXU matmul + lane-dense store ---
    scores_ref[...] = (jnp.dot(h_all_sc[...].astype(jnp.bfloat16), wout_ref[...],
                               preferred_element_type=jnp.float32)
                       + bout_ref[...])


def char_decoder_forward(input_ids, dec_hidden, params):
    """Pallas-backed equivalent of CharDecoder.forward.

    input_ids : (L, B) int32
    dec_hidden: tuple of (1, B, H) f32 arrays, or None
    returns   : scores (L, B, V) f32, (h, c) each (1, B, H) f32
    """
    emb_gates = params["emb_gates_bf16"]        # (Vr, 4H) bf16
    w_hh_t = params["w_hh_t_reord_bf16"]        # (H, 4H) bf16
    b_gates = params["b_gates_reord"]           # (1, 4H) f32
    w_out_t_pad = params["w_out_t_pad_bf16"]    # (H, Vp) bf16
    b_out_pad = params["b_out_pad"]             # (1, Vp) f32
    V = params["vocab_size"]

    L, B = input_ids.shape
    H = w_hh_t.shape[0]
    Vp = w_out_t_pad.shape[1]
    Bp = _round_up(max(B, 8), 8)                # pad batch to the sublane tile

    # Pad ids / initial state to Bp rows. Pad-char id 0 maps to the zero
    # padding-embedding row, so pad rows stay finite and are sliced off below.
    ids_pad = jnp.zeros((L, Bp), jnp.int32).at[:, :B].set(input_ids.astype(jnp.int32))
    ids_flat = ids_pad.reshape(L * Bp, 1)

    if dec_hidden is None:
        h0 = jnp.zeros((Bp, H), jnp.float32)
        c0 = jnp.zeros((Bp, H), jnp.float32)
    else:
        h0 = jnp.zeros((Bp, H), jnp.float32).at[:B].set(
            dec_hidden[0].reshape(B, H).astype(jnp.float32))
        c0 = jnp.zeros((Bp, H), jnp.float32).at[:B].set(
            dec_hidden[1].reshape(B, H).astype(jnp.float32))

    kernel = functools.partial(_char_decoder_kernel, seq_len=L)

    grid_spec = pltpu.PrefetchScalarGridSpec(
        num_scalar_prefetch=0,
        grid=(1,),
        in_specs=[
            pl.BlockSpec((L * Bp, 1), lambda i: (0, 0)),       # char ids
            pl.BlockSpec(emb_gates.shape, lambda i: (0, 0)),   # emb @ W_ih^T
            pl.BlockSpec((H, 4 * H), lambda i: (0, 0)),        # W_hh^T
            pl.BlockSpec((1, 4 * H), lambda i: (0, 0)),        # gate bias
            pl.BlockSpec((H, Vp), lambda i: (0, 0)),           # W_out^T (padded)
            pl.BlockSpec((1, Vp), lambda i: (0, 0)),           # out bias (padded)
            pl.BlockSpec((Bp, H), lambda i: (0, 0)),           # h0
            pl.BlockSpec((Bp, H), lambda i: (0, 0)),           # c0
        ],
        out_specs=[
            pl.BlockSpec((L * Bp, Vp), lambda i: (0, 0)),      # scores slab
            pl.BlockSpec((Bp, H), lambda i: (0, 0)),           # final h
            pl.BlockSpec((Bp, H), lambda i: (0, 0)),           # final c
        ],
        scratch_shapes=[
            pltpu.VMEM((L * Bp, 4 * H), jnp.float32),          # x-gate preacts
            pltpu.VMEM((L * Bp, H), jnp.float32),              # all hidden states
        ],
    )

    scores_flat, h_t, c_t = pl.pallas_call(
        kernel,
        grid_spec=grid_spec,
        out_shape=(
            jax.ShapeDtypeStruct((L * Bp, Vp), jnp.float32),
            jax.ShapeDtypeStruct((Bp, H), jnp.float32),
            jax.ShapeDtypeStruct((Bp, H), jnp.float32),
        ),
        compiler_params=pltpu.CompilerParams(
            dimension_semantics=("arbitrary",),   # single sequential launch
        ),
    )(ids_flat, emb_gates, w_hh_t, b_gates, w_out_t_pad, b_out_pad, h0, c0)

    # TODO(synk): downstream consumers (softmax/CE in train_forward, argmax in
    # decode_greedy) should consume the padded (L, Bp, Vp) slab directly; the
    # slice below materializes an extra copy only to match the module's API.
    scores = scores_flat.reshape(L, Bp, Vp)[:, :B, :V]
    return scores, (h_t[None, :B, :], c_t[None, :B, :])


def _reference_forward(input_ids, dec_hidden, params):
    """Pure-JAX f32 reference (lax.scan LSTM, PyTorch gate order [i,f,g,o])."""
    emb = params["embedding"]
    w_ih_t, w_hh_t = params["w_ih_t"], params["w_hh_t"]
    b_gates = params["b_gates"]
    w_out_t, b_out = params["w_out_t"], params["b_out"]
    L, B = input_ids.shape
    H = w_hh_t.shape[0]
    h0 = dec_hidden[0].reshape(B, H)
    c0 = dec_hidden[1].reshape(B, H)
    x_emb = jnp.take(emb, input_ids, axis=0).astype(jnp.float32)

    def step(carry, x_t):
        h, c = carry
        gates = x_t @ w_ih_t + h @ w_hh_t + b_gates
        i = jax.nn.sigmoid(gates[:, 0 * H:1 * H])
        f = jax.nn.sigmoid(gates[:, 1 * H:2 * H])
        g = jnp.tanh(gates[:, 2 * H:3 * H])
        o = jax.nn.sigmoid(gates[:, 3 * H:4 * H])
        c_new = f * c + i * g
        h_new = o * jnp.tanh(c_new)
        return (h_new, c_new), h_new @ w_out_t + b_out

    (h_t, c_t), scores = lax.scan(step, (h0, c0), x_emb)
    return scores, (h_t[None], c_t[None])


def make_params(key, vocab_size, char_embedding_size, hidden_size, char_pad=0):
    """Deterministic synthetic params (shapes match nn.LSTM / nn.Linear / nn.Embedding)."""
    V, E, H = vocab_size, char_embedding_size, hidden_size
    ks = jax.random.split(key, 7)
    scale = 0.1
    embedding = scale * jax.random.normal(ks[0], (V, E), jnp.float32)
    embedding = embedding.at[char_pad].set(0.0)              # padding_idx row zero
    w_ih = scale * jax.random.normal(ks[1], (4 * H, E), jnp.float32)
    w_hh = scale * jax.random.normal(ks[2], (4 * H, H), jnp.float32)
    b_ih = scale * jax.random.normal(ks[3], (4 * H,), jnp.float32)
    b_hh = scale * jax.random.normal(ks[4], (4 * H,), jnp.float32)
    w_out = scale * jax.random.normal(ks[5], (V, H), jnp.float32)
    b_out = scale * jax.random.normal(ks[6], (V,), jnp.float32)

    # Permute PyTorch's [i, f, g, o] gate rows to [i, f, o, g] so the kernel
    # applies one sigmoid over a contiguous 3H span and one tanh over H.
    perm = jnp.concatenate([jnp.arange(0, 2 * H),
                            jnp.arange(3 * H, 4 * H),
                            jnp.arange(2 * H, 3 * H)])
    w_ih_r, w_hh_r = w_ih[perm], w_hh[perm]
    b_r = (b_ih + b_hh)[perm]

    # Fold the embedding into the input->hidden projection (exact refactor):
    # x_t @ W_ih^T == one_hot(id_t) @ (emb @ W_ih^T). Row-pad to a multiple of 8.
    emb_gates = embedding @ w_ih_r.T                         # (V, 4H), reordered
    v_rows = _round_up(V, 8)
    emb_gates_pad = jnp.zeros((v_rows, 4 * H), jnp.float32).at[:V].set(emb_gates)

    # Lane-dense padding of the output projection (sliced back outside kernel).
    v_pad = _round_up(V, 128)
    w_out_t_pad = jnp.zeros((H, v_pad), jnp.float32).at[:, :V].set(w_out.T)
    b_out_pad = jnp.zeros((1, v_pad), jnp.float32).at[:, :V].set(b_out)

    return {
        # f32 / PyTorch-ordered copies (pure-JAX reference only)
        "embedding": embedding,
        "w_ih_t": w_ih.T,                          # (E, 4H)
        "w_hh_t": w_hh.T,                          # (H, 4H)
        "b_gates": (b_ih + b_hh)[None, :],         # (1, 4H)
        "w_out_t": w_out.T,                        # (H, V)
        "b_out": b_out[None, :],                   # (1, V)
        # kernel params: bf16 matmul operands, f32 biases, gates in [i,f,o,g]
        "emb_gates_bf16": emb_gates_pad.astype(jnp.bfloat16),   # (Vr, 4H)
        "w_hh_t_reord_bf16": w_hh_r.T.astype(jnp.bfloat16),     # (H, 4H)
        "b_gates_reord": b_r[None, :],                          # (1, 4H)
        "w_out_t_pad_bf16": w_out_t_pad.astype(jnp.bfloat16),   # (H, Vp)
        "b_out_pad": b_out_pad,                                 # (1, Vp)
        "vocab_size": V,
    }


if __name__ == "__main__":
    # Small shapes consistent with CharDecoder.forward:
    #   length L=8, batch B=4, char_embedding_size E=50, hidden H=32, vocab V=30
    L, B, E, H, V = 8, 4, 50, 32, 30
    key = jax.random.PRNGKey(0)
    k_ids, k_h, k_c, k_params = jax.random.split(key, 4)

    params = make_params(k_params, vocab_size=V, char_embedding_size=E,
                         hidden_size=H, char_pad=0)

    input_ids = jax.random.randint(k_ids, (L, B), 0, V, dtype=jnp.int32)
    h0 = 0.1 * jax.random.normal(k_h, (1, B, H), jnp.float32)
    c0 = 0.1 * jax.random.normal(k_c, (1, B, H), jnp.float32)

    scores, (h_t, c_t) = char_decoder_forward(input_ids, (h0, c0), params)
    jax.block_until_ready((scores, h_t, c_t))

    # Correctness check against a pure-JAX f32 lax.scan reference. Tolerance is
    # loosened vs. the f32 version because matmul operands are bf16 (f32 accum).
    ref_scores, (ref_h, ref_c) = _reference_forward(input_ids, (h0, c0), params)
    np.testing.assert_allclose(np.asarray(scores), np.asarray(ref_scores), atol=2e-2, rtol=2e-2)
    np.testing.assert_allclose(np.asarray(h_t), np.asarray(ref_h), atol=2e-2, rtol=2e-2)
    np.testing.assert_allclose(np.asarray(c_t), np.asarray(ref_c), atol=2e-2, rtol=2e-2)

    assert scores.shape == (L, B, V) and h_t.shape == (1, B, H) and c_t.shape == (1, B, H)
    print("KERNEL_OK")
</pallas_src>

<mosaic_0001>
module attributes {stable_mosaic.version = 11 : i64} {
  func.func @_char_decoder_kernel(%arg0: i32, %arg1: memref<64x1xi32, #tpu.memory_space<vmem>>, %arg2: memref<32x128xbf16, #tpu.memory_space<vmem>>, %arg3: memref<32x128xbf16, #tpu.memory_space<vmem>>, %arg4: memref<1x128xf32, #tpu.memory_space<vmem>>, %arg5: memref<32x128xbf16, #tpu.memory_space<vmem>>, %arg6: memref<1x128xf32, #tpu.memory_space<vmem>>, %arg7: memref<8x32xf32, #tpu.memory_space<vmem>>, %arg8: memref<8x32xf32, #tpu.memory_space<vmem>>, %arg9: memref<64x128xf32, #tpu.memory_space<vmem>>, %arg10: memref<8x32xf32, #tpu.memory_space<vmem>>, %arg11: memref<8x32xf32, #tpu.memory_space<vmem>>, %arg12: memref<64x128xf32, #tpu.memory_space<vmem>>, %arg13: memref<64x32xf32, #tpu.memory_space<vmem>>) attributes {dimension_semantics = [#tpu.dimension_semantics<arbitrary>], iteration_bounds = array<i64: 1>, scalar_prefetch = 0 : i64, scratch_operands = 2 : i64, tpu.core_type = #tpu.core_type<tc>, window_params = [{pipeline_mode = #tpu.pipeline_mode<synchronous>, transform_indices = @transform_0, window_bounds = array<i64: 64, 1>}, {pipeline_mode = #tpu.pipeline_mode<synchronous>, transform_indices = @transform_1, window_bounds = array<i64: 32, 128>}, {pipeline_mode = #tpu.pipeline_mode<synchronous>, transform_indices = @transform_2, window_bounds = array<i64: 32, 128>}, {pipeline_mode = #tpu.pipeline_mode<synchronous>, transform_indices = @transform_3, window_bounds = array<i64: 1, 128>}, {pipeline_mode = #tpu.pipeline_mode<synchronous>, transform_indices = @transform_4, window_bounds = array<i64: 32, 128>}, {pipeline_mode = #tpu.pipeline_mode<synchronous>, transform_indices = @transform_5, window_bounds = array<i64: 1, 128>}, {pipeline_mode = #tpu.pipeline_mode<synchronous>, transform_indices = @transform_6, window_bounds = array<i64: 8, 32>}, {pipeline_mode = #tpu.pipeline_mode<synchronous>, transform_indices = @transform_7, window_bounds = array<i64: 8, 32>}, {pipeline_mode = #tpu.pipeline_mode<synchronous>, transform_indices = @transform_8, window_bounds = array<i64: 64, 128>}, {pipeline_mode = #tpu.pipeline_mode<synchronous>, transform_indices = @transform_9, window_bounds = array<i64: 8, 32>}, {pipeline_mode = #tpu.pipeline_mode<synchronous>, transform_indices = @transform_10, window_bounds = array<i64: 8, 32>}]} {
    %c0 = arith.constant 0 : index
    %c0_0 = arith.constant 0 : index
    %0 = vector.load %arg1[%c0, %c0_0] : memref<64x1xi32, #tpu.memory_space<vmem>>, vector<64x1xi32>
    %1 = tpu.iota {dimensions = array<i32: 1>} : vector<64x32xi32>
    %2 = vector.broadcast %0 : vector<64x1xi32> to vector<64x32xi32>
    %3 = arith.cmpi eq, %1, %2 : vector<64x32xi32>
    %cst = arith.constant 1.000000e+00 : f32
    %cst_1 = arith.constant 0.000000e+00 : f32
    %4 = vector.broadcast %cst : f32 to vector<64x32xf32>
    %5 = vector.broadcast %cst_1 : f32 to vector<64x32xf32>
    %6 = arith.select %3, %4, %5 : vector<64x32xi1>, vector<64x32xf32>
    %7 = arith.truncf %6 : vector<64x32xf32> to vector<64x32xbf16>
    %c0_2 = arith.constant 0 : index
    %c0_3 = arith.constant 0 : index
    %8 = vector.load %arg2[%c0_2, %c0_3] : memref<32x128xbf16, #tpu.memory_space<vmem>>, vector<32x128xbf16>
    %cst_4 = arith.constant dense<0.000000e+00> : vector<64x128xf32>
    %9 = tpu.matmul %7, %8, %cst_4 {dimension_numbers = #tpu.dot_dimension_numbers<[1], [0], [0], [1], [0, 0, 1, 1], [], []>} : vector<64x32xbf16>, vector<32x128xbf16>, vector<64x128xf32> -> vector<64x128xf32>
    %c0_5 = arith.constant 0 : index
    %c0_6 = arith.constant 0 : index
    %10 = vector.load %arg4[%c0_5, %c0_6] : memref<1x128xf32, #tpu.memory_space<vmem>>, vector<1x128xf32>
    %11 = vector.broadcast %10 : vector<1x128xf32> to vector<64x128xf32>
    %12 = arith.addf %9, %11 : vector<64x128xf32>
    %c0_7 = arith.constant 0 : index
    %c0_8 = arith.constant 0 : index
    %13 = vector.load %arg12[%c0_7, %c0_8] : memref<64x128xf32, #tpu.memory_space<vmem>>, vector<64x128xf32>
    tpu.vector_store %arg12[%c0_7, %c0_8], %12 {strides = array<i32>} : memref<64x128xf32, #tpu.memory_space<vmem>>, vector<64x128xf32>,
    %c0_9 = arith.constant 0 : index
    %c0_10 = arith.constant 0 : index
    %14 = vector.load %arg3[%c0_9, %c0_10] : memref<32x128xbf16, #tpu.memory_space<vmem>>, vector<32x128xbf16>
    %c0_11 = arith.constant 0 : index
    %c0_12 = arith.constant 0 : index
    %15 = vector.load %arg7[%c0_11, %c0_12] : memref<8x32xf32, #tpu.memory_space<vmem>>, vector<8x32xf32>
    %c0_13 = arith.constant 0 : index
    %c0_14 = arith.constant 0 : index
    %16 = vector.load %arg8[%c0_13, %c0_14] : memref<8x32xf32, #tpu.memory_space<vmem>>, vector<8x32xf32>
    %c0_i32 = arith.constant 0 : i32
    %c8_i32 = arith.constant 8 : i32
    %17 = arith.muli %c0_i32, %c8_i32 : i32
    %18 = tpu.assume_multiple %17, 8 : i32
    %19 = arith.index_cast %18 : i32 to index
    %c0_15 = arith.constant 0 : index
    %20 = vector.load %arg12[%19, %c0_15] : memref<64x128xf32, #tpu.memory_space<vmem>>, vector<8x128xf32>
    %21 = arith.truncf %15 : vector<8x32xf32> to vector<8x32xbf16>
    %cst_16 = arith.constant dense<0.000000e+00> : vector<8x128xf32>
    %22 = tpu.matmul %21, %14, %cst_16 {dimension_numbers = #tpu.dot_dimension_numbers<[1], [0], [0], [1], [0, 0, 1, 1], [], []>} : vector<8x32xbf16>, vector<32x128xbf16>, vector<8x128xf32> -> vector<8x128xf32>
    %23 = arith.addf %20, %22 : vector<8x128xf32>
    %24 = vector.extract_strided_slice %23 {offsets = [0, 0], sizes = [8, 96], strides = [1, 1]} : vector<8x128xf32> to vector<8x96xf32>
    %25 = arith.negf %24 : vector<8x96xf32>
    %26 = math.exp %25 : vector<8x96xf32>
    %cst_17 = arith.constant 1.000000e+00 : f32
    %27 = vector.broadcast %cst_17 : f32 to vector<8x96xf32>
    %28 = arith.addf %27, %26 : vector<8x96xf32>
    %29 = arith.divf %27, %28 : vector<8x96xf32>
    %30 = vector.extract_strided_slice %23 {offsets = [0, 96], sizes = [8, 32], strides = [1, 1]} : vector<8x128xf32> to vector<8x32xf32>
    %31 = math.tanh %30 : vector<8x32xf32>
    %32 = vector.extract_strided_slice %29 {offsets = [0, 0], sizes = [8, 32], strides = [1, 1]} : vector<8x96xf32> to vector<8x32xf32>
    %33 = vector.extract_strided_slice %29 {offsets = [0, 32], sizes = [8, 32], strides = [1, 1]} : vector<8x96xf32> to vector<8x32xf32>
    %34 = vector.extract_strided_slice %29 {offsets = [0, 64], sizes = [8, 32], strides = [1, 1]} : vector<8x96xf32> to vector<8x32xf32>
    %35 = arith.mulf %33, %16 : vector<8x32xf32>
    %36 = arith.mulf %32, %31 : vector<8x32xf32>
    %37 = arith.addf %35, %36 : vector<8x32xf32>
    %38 = math.tanh %37 : vector<8x32xf32>
    %39 = arith.mulf %34, %38 : vector<8x32xf32>
    %40 = arith.index_cast %18 : i32 to index
    %c0_18 = arith.constant 0 : index
    %41 = vector.load %arg13[%40, %c0_18] : memref<64x32xf32, #tpu.memory_space<vmem>>, vector<8x32xf32>
    tpu.vector_store %arg13[%40, %c0_18], %39 {strides = array<i32>} : memref<64x32xf32, #tpu.memory_space<vmem>>, vector<8x32xf32>,
    %c1_i32 = arith.constant 1 : i32
    %c8_i32_19 = arith.constant 8 : i32
    %42 = arith.muli %c1_i32, %c8_i32_19 : i32
    %43 = tpu.assume_multiple %42, 8 : i32
    %44 = arith.index_cast %43 : i32 to index
    %c0_20 = arith.constant 0 : index
    %45 = vector.load %arg12[%44, %c0_20] : memref<64x128xf32, #tpu.memory_space<vmem>>, vector<8x128xf32>
    %46 = arith.truncf %39 : vector<8x32xf32> to vector<8x32xbf16>
    %cst_21 = arith.constant dense<0.000000e+00> : vector<8x128xf32>
    %47 = tpu.matmul %46, %14, %cst_21 {dimension_numbers = #tpu.dot_dimension_numbers<[1], [0], [0], [1], [0, 0, 1, 1], [], []>} : vector<8x32xbf16>, vector<32x128xbf16>, vector<8x128xf32> -> vector<8x128xf32>
    %48 = arith.addf %45, %47 : vector<8x128xf32>
    %49 = vector.extract_strided_slice %48 {offsets = [0, 0], sizes = [8, 96], strides = [1, 1]} : vector<8x128xf32> to vector<8x96xf32>
    %50 = arith.negf %49 : vector<8x96xf32>
    %51 = math.exp %50 : vector<8x96xf32>
    %cst_22 = arith.constant 1.000000e+00 : f32
    %52 = vector.broadcast %cst_22 : f32 to vector<8x96xf32>
    %53 = arith.addf %52, %51 : vector<8x96xf32>
    %54 = arith.divf %52, %53 : vector<8x96xf32>
    %55 = vector.extract_strided_slice %48 {offsets = [0, 96], sizes = [8, 32], strides = [1, 1]} : vector<8x128xf32> to vector<8x32xf32>
    %56 = math.tanh %55 : vector<8x32xf32>
    %57 = vector.extract_strided_slice %54 {offsets = [0, 0], sizes = [8, 32], strides = [1, 1]} : vector<8x96xf32> to vector<8x32xf32>
    %58 = vector.extract_strided_slice %54 {offsets = [0, 32], sizes = [8, 32], strides = [1, 1]} : vector<8x96xf32> to vector<8x32xf32>
    %59 = vector.extract_strided_slice %54 {offsets = [0, 64], sizes = [8, 32], strides = [1, 1]} : vector<8x96xf32> to vector<8x32xf32>
    %60 = arith.mulf %58, %37 : vector<8x32xf32>
    %61 = arith.mulf %57, %56 : vector<8x32xf32>
    %62 = arith.addf %60, %61 : vector<8x32xf32>
    %63 = math.tanh %62 : vector<8x32xf32>
    %64 = arith.mulf %59, %63 : vector<8x32xf32>
    %65 = arith.index_cast %43 : i32 to index
    %c0_23 = arith.constant 0 : index
    %66 = vector.load %arg13[%65, %c0_23] : memref<64x32xf32, #tpu.memory_space<vmem>>, vector<8x32xf32>
    tpu.vector_store %arg13[%65, %c0_23], %64 {strides = array<i32>} : memref<64x32xf32, #tpu.memory_space<vmem>>, vector<8x32xf32>,
    %c2_i32 = arith.constant 2 : i32
    %c8_i32_24 = arith.constant 8 : i32
    %67 = arith.muli %c2_i32, %c8_i32_24 : i32
    %68 = tpu.assume_multiple %67, 8 : i32
    %69 = arith.index_cast %68 : i32 to index
    %c0_25 = arith.constant 0 : index
    %70 = vector.load %arg12[%69, %c0_25] : memref<64x128xf32, #tpu.memory_space<vmem>>, vector<8x128xf32>
    %71 = arith.truncf %64 : vector<8x32xf32> to vector<8x32xbf16>
    %cst_26 = arith.constant dense<0.000000e+00> : vector<8x128xf32>
    %72 = tpu.matmul %71, %14, %cst_26 {dimension_numbers = #tpu.dot_dimension_numbers<[1], [0], [0], [1], [0, 0, 1, 1], [], []>} : vector<8x32xbf16>, vector<32x128xbf16>, vector<8x128xf32> -> vector<8x128xf32>
    %73 = arith.addf %70, %72 : vector<8x128xf32>
    %74 = vector.extract_strided_slice %73 {offsets = [0, 0], sizes = [8, 96], strides = [1, 1]} : vector<8x128xf32> to vector<8x96xf32>
    %75 = arith.negf %74 : vector<8x96xf32>
    %76 = math.exp %75 : vector<8x96xf32>
    %cst_27 = arith.constant 1.000000e+00 : f32
    %77 = vector.broadcast %cst_27 : f32 to vector<8x96xf32>
    %78 = arith.addf %77, %76 : vector<8x96xf32>
    %79 = arith.divf %77, %78 : vector<8x96xf32>
    %80 = vector.extract_strided_slice %73 {offsets = [0, 96], sizes = [8, 32], strides = [1, 1]} : vector<8x128xf32> to vector<8x32xf32>
    %81 = math.tanh %80 : vector<8x32xf32>
    %82 = vector.extract_strided_slice %79 {offsets = [0, 0], sizes = [8, 32], strides = [1, 1]} : vector<8x96xf32> to vector<8x32xf32>
    %83 = vector.extract_strided_slice %79 {offsets = [0, 32], sizes = [8, 32], strides = [1, 1]} : vector<8x96xf32> to vector<8x32xf32>
    %84 = vector.extract_strided_slice %79 {offsets = [0, 64], sizes = [8, 32], strides = [1, 1]} : vector<8x96xf32> to vector<8x32xf32>
    %85 = arith.mulf %83, %62 : vector<8x32xf32>
    %86 = arith.mulf %82, %81 : vector<8x32xf32>
    %87 = arith.addf %85, %86 : vector<8x32xf32>
    %88 = math.tanh %87 : vector<8x32xf32>
    %89 = arith.mulf %84, %88 : vector<8x32xf32>
    %90 = arith.index_cast %68 : i32 to index
    %c0_28 = arith.constant 0 : index
    %91 = vector.load %arg13[%90, %c0_28] : memref<64x32xf32, #tpu.memory_space<vmem>>, vector<8x32xf32>
    tpu.vector_store %arg13[%90, %c0_28], %89 {strides = array<i32>} : memref<64x32xf32, #tpu.memory_space<vmem>>, vector<8x32xf32>,
    %c3_i32 = arith.constant 3 : i32
    %c8_i32_29 = arith.constant 8 : i32
    %92 = arith.muli %c3_i32, %c8_i32_29 : i32
    %93 = tpu.assume_multiple %92, 8 : i32
    %94 = arith.index_cast %93 : i32 to index
    %c0_30 = arith.constant 0 : index
    %95 = vector.load %arg12[%94, %c0_30] : memref<64x128xf32, #tpu.memory_space<vmem>>, vector<8x128xf32>
    %96 = arith.truncf %89 : vector<8x32xf32> to vector<8x32xbf16>
    %cst_31 = arith.constant dense<0.000000e+00> : vector<8x128xf32>
    %97 = tpu.matmul %96, %14, %cst_31 {dimension_numbers = #tpu.dot_dimension_numbers<[1], [0], [0], [1], [0, 0, 1, 1], [], []>} : vector<8x32xbf16>, vector<32x128xbf16>, vector<8x128xf32> -> vector<8x128xf32>
    %98 = arith.addf %95, %97 : vector<8x128xf32>
    %99 = vector.extract_strided_slice %98 {offsets = [0, 0], sizes = [8, 96], strides = [1, 1]} : vector<8x128xf32> to vector<8x96xf32>
    %100 = arith.negf %99 : vector<8x96xf32>
    %101 = math.exp %100 : vector<8x96xf32>
    %cst_32 = arith.constant 1.000000e+00 : f32
    %102 = vector.broadcast %cst_32 : f32 to vector<8x96xf32>
    %103 = arith.addf %102, %101 : vector<8x96xf32>
    %104 = arith.divf %102, %103 : vector<8x96xf32>
    %105 = vector.extract_strided_slice %98 {offsets = [0, 96], sizes = [8, 32], strides = [1, 1]} : vector<8x128xf32> to vector<8x32xf32>
    %106 = math.tanh %105 : vector<8x32xf32>
    %107 = vector.extract_strided_slice %104 {offsets = [0, 0], sizes = [8, 32], strides = [1, 1]} : vector<8x96xf32> to vector<8x32xf32>
    %108 = vector.extract_strided_slice %104 {offsets = [0, 32], sizes = [8, 32], strides = [1, 1]} : vector<8x96xf32> to vector<8x32xf32>
    %109 = vector.extract_strided_slice %104 {offsets = [0, 64], sizes = [8, 32], strides = [1, 1]} : vector<8x96xf32> to vector<8x32xf32>
    %110 = arith.mulf %108, %87 : vector<8x32xf32>
    %111 = arith.mulf %107, %106 : vector<8x32xf32>
    %112 = arith.addf %110, %111 : vector<8x32xf32>
    %113 = math.tanh %112 : vector<8x32xf32>
    %114 = arith.mulf %109, %113 : vector<8x32xf32>
    %115 = arith.index_cast %93 : i32 to index
    %c0_33 = arith.constant 0 : index
    %116 = vector.load %arg13[%115, %c0_33] : memref<64x32xf32, #tpu.memory_space<vmem>>, vector<8x32xf32>
    tpu.vector_store %arg13[%115, %c0_33], %114 {strides = array<i32>} : memref<64x32xf32, #tpu.memory_space<vmem>>, vector<8x32xf32>,
    %c4_i32 = arith.constant 4 : i32
    %c8_i32_34 = arith.constant 8 : i32
    %117 = arith.muli %c4_i32, %c8_i32_34 : i32
    %118 = tpu.assume_multiple %117, 8 : i32
    %119 = arith.index_cast %118 : i32 to index
    %c0_35 = arith.constant 0 : index
    %120 = vector.load %arg12[%119, %c0_35] : memref<64x128xf32, #tpu.memory_space<vmem>>, vector<8x128xf32>
    %121 = arith.truncf %114 : vector<8x32xf32> to vector<8x32xbf16>
    %cst_36 = arith.constant dense<0.000000e+00> : vector<8x128xf32>
    %122 = tpu.matmul %121, %14, %cst_36 {dimension_numbers = #tpu.dot_dimension_numbers<[1], [0], [0], [1], [0, 0, 1, 1], [], []>} : vector<8x32xbf16>, vector<32x128xbf16>, vector<8x128xf32> -> vector<8x128xf32>
    %123 = arith.addf %120, %122 : vector<8x128xf32>
    %124 = vector.extract_strided_slice %123 {offsets = [0, 0], sizes = [8, 96], strides = [1, 1]} : vector<8x128xf32> to vector<8x96xf32>
    %125 = arith.negf %124 : vector<8x96xf32>
    %126 = math.exp %125 : vector<8x96xf32>
    %cst_37 = arith.constant 1.000000e+00 : f32
    %127 = vector.broadcast %cst_37 : f32 to vector<8x96xf32>
    %128 = arith.addf %127, %126 : vector<8x96xf32>
    %129 = arith.divf %127, %128 : vector<8x96xf32>
    %130 = vector.extract_strided_slice %123 {offsets = [0, 96], sizes = [8, 32], strides = [1, 1]} : vector<8x128xf32> to vector<8x32xf32>
    %131 = math.tanh %130 : vector<8x32xf32>
    %132 = vector.extract_strided_slice %129 {offsets = [0, 0], sizes = [8, 32], strides = [1, 1]} : vector<8x96xf32> to vector<8x32xf32>
    %133 = vector.extract_strided_slice %129 {offsets = [0, 32], sizes = [8, 32], strides = [1, 1]} : vector<8x96xf32> to vector<8x32xf32>
    %134 = vector.extract_strided_slice %129 {offsets = [0, 64], sizes = [8, 32], strides = [1, 1]} : vector<8x96xf32> to vector<8x32xf32>
    %135 = arith.mulf %133, %112 : vector<8x32xf32>
    %136 = arith.mulf %132, %131 : vector<8x32xf32>
    %137 = arith.addf %135, %136 : vector<8x32xf32>
    %138 = math.tanh %137 : vector<8x32xf32>
    %139 = arith.mulf %134, %138 : vector<8x32xf32>
    %140 = arith.index_cast %118 : i32 to index
    %c0_38 = arith.constant 0 : index
    %141 = vector.load %arg13[%140, %c0_38] : memref<64x32xf32, #tpu.memory_space<vmem>>, vector<8x32xf32>
    tpu.vector_store %arg13[%140, %c0_38], %139 {strides = array<i32>} : memref<64x32xf32, #tpu.memory_space<vmem>>, vector<8x32xf32>,
    %c5_i32 = arith.constant 5 : i32
    %c8_i32_39 = arith.constant 8 : i32
    %142 = arith.muli %c5_i32, %c8_i32_39 : i32
    %143 = tpu.assume_multiple %142, 8 : i32
    %144 = arith.index_cast %143 : i32 to index
    %c0_40 = arith.constant 0 : index
    %145 = vector.load %arg12[%144, %c0_40] : memref<64x128xf32, #tpu.memory_space<vmem>>, vector<8x128xf32>
    %146 = arith.truncf %139 : vector<8x32xf32> to vector<8x32xbf16>
    %cst_41 = arith.constant dense<0.000000e+00> : vector<8x128xf32>
    %147 = tpu.matmul %146, %14, %cst_41 {dimension_numbers = #tpu.dot_dimension_numbers<[1], [0], [0], [1], [0, 0, 1, 1], [], []>} : vector<8x32xbf16>, vector<32x128xbf16>, vector<8x128xf32> -> vector<8x128xf32>
    %148 = arith.addf %145, %147 : vector<8x128xf32>
    %149 = vector.extract_strided_slice %148 {offsets = [0, 0], sizes = [8, 96], strides = [1, 1]} : vector<8x128xf32> to vector<8x96xf32>
    %150 = arith.negf %149 : vector<8x96xf32>
    %151 = math.exp %150 : vector<8x96xf32>
    %cst_42 = arith.constant 1.000000e+00 : f32
    %152 = vector.broadcast %cst_42 : f32 to vector<8x96xf32>
    %153 = arith.addf %152, %151 : vector<8x96xf32>
    %154 = arith.divf %152, %153 : vector<8x96xf32>
    %155 = vector.extract_strided_slice %148 {offsets = [0, 96], sizes = [8, 32], strides = [1, 1]} : vector<8x128xf32> to vector<8x32xf32>
    %156 = math.tanh %155 : vector<8x32xf32>
    %157 = vector.extract_strided_slice %154 {offsets = [0, 0], sizes = [8, 32], strides = [1, 1]} : vector<8x96xf32> to vector<8x32xf32>
    %158 = vector.extract_strided_slice %154 {offsets = [0, 32], sizes = [8, 32], strides = [1, 1]} : vector<8x96xf32> to vector<8x32xf32>
    %159 = vector.extract_strided_slice %154 {offsets = [0, 64], sizes = [8, 32], strides = [1, 1]} : vector<8x96xf32> to vector<8x32xf32>
    %160 = arith.mulf %158, %137 : vector<8x32xf32>
    %161 = arith.mulf %157, %156 : vector<8x32xf32>
    %162 = arith.addf %160, %161 : vector<8x32xf32>
    %163 = math.tanh %162 : vector<8x32xf32>
    %164 = arith.mulf %159, %163 : vector<8x32xf32>
    %165 = arith.index_cast %143 : i32 to index
    %c0_43 = arith.constant 0 : index
    %166 = vector.load %arg13[%165, %c0_43] : memref<64x32xf32, #tpu.memory_space<vmem>>, vector<8x32xf32>
    tpu.vector_store %arg13[%165, %c0_43], %164 {strides = array<i32>} : memref<64x32xf32, #tpu.memory_space<vmem>>, vector<8x32xf32>,
    %c6_i32 = arith.constant 6 : i32
    %c8_i32_44 = arith.constant 8 : i32
    %167 = arith.muli %c6_i32, %c8_i32_44 : i32
    %168 = tpu.assume_multiple %167, 8 : i32
    %169 = arith.index_cast %168 : i32 to index
    %c0_45 = arith.constant 0 : index
    %170 = vector.load %arg12[%169, %c0_45] : memref<64x128xf32, #tpu.memory_space<vmem>>, vector<8x128xf32>
    %171 = arith.truncf %164 : vector<8x32xf32> to vector<8x32xbf16>
    %cst_46 = arith.constant dense<0.000000e+00> : vector<8x128xf32>
    %172 = tpu.matmul %171, %14, %cst_46 {dimension_numbers = #tpu.dot_dimension_numbers<[1], [0], [0], [1], [0, 0, 1, 1], [], []>} : vector<8x32xbf16>, vector<32x128xbf16>, vector<8x128xf32> -> vector<8x128xf32>
    %173 = arith.addf %170, %172 : vector<8x128xf32>
    %174 = vector.extract_strided_slice %173 {offsets = [0, 0], sizes = [8, 96], strides = [1, 1]} : vector<8x128xf32> to vector<8x96xf32>
    %175 = arith.negf %174 : vector<8x96xf32>
    %176 = math.exp %175 : vector<8x96xf32>
    %cst_47 = arith.constant 1.000000e+00 : f32
    %177 = vector.broadcast %cst_47 : f32 to vector<8x96xf32>
    %178 = arith.addf %177, %176 : vector<8x96xf32>
    %179 = arith.divf %177, %178 : vector<8x96xf32>
    %180 = vector.extract_strided_slice %173 {offsets = [0, 96], sizes = [8, 32], strides = [1, 1]} : vector<8x128xf32> to vector<8x32xf32>
    %181 = math.tanh %180 : vector<8x32xf32>
    %182 = vector.extract_strided_slice %179 {offsets = [0, 0], sizes = [8, 32], strides = [1, 1]} : vector<8x96xf32> to vector<8x32xf32>
    %183 = vector.extract_strided_slice %179 {offsets = [0, 32], sizes = [8, 32], strides = [1, 1]} : vector<8x96xf32> to vector<8x32xf32>
    %184 = vector.extract_strided_slice %179 {offsets = [0, 64], sizes = [8, 32], strides = [1, 1]} : vector<8x96xf32> to vector<8x32xf32>
    %185 = arith.mulf %183, %162 : vector<8x32xf32>
    %186 = arith.mulf %182, %181 : vector<8x32xf32>
    %187 = arith.addf %185, %186 : vector<8x32xf32>
    %188 = math.tanh %187 : vector<8x32xf32>
    %189 = arith.mulf %184, %188 : vector<8x32xf32>
    %190 = arith.index_cast %168 : i32 to index
    %c0_48 = arith.constant 0 : index
    %191 = vector.load %arg13[%190, %c0_48] : memref<64x32xf32, #tpu.memory_space<vmem>>, vector<8x32xf32>
    tpu.vector_store %arg13[%190, %c0_48], %189 {strides = array<i32>} : memref<64x32xf32, #tpu.memory_space<vmem>>, vector<8x32xf32>,
    %c7_i32 = arith.constant 7 : i32
    %c8_i32_49 = arith.constant 8 : i32
    %192 = arith.muli %c7_i32, %c8_i32_49 : i32
    %193 = tpu.assume_multiple %192, 8 : i32
    %194 = arith.index_cast %193 : i32 to index
    %c0_50 = arith.constant 0 : index
    %195 = vector.load %arg12[%194, %c0_50] : memref<64x128xf32, #tpu.memory_space<vmem>>, vector<8x128xf32>
    %196 = arith.truncf %189 : vector<8x32xf32> to vector<8x32xbf16>
    %cst_51 = arith.constant dense<0.000000e+00> : vector<8x128xf32>
    %197 = tpu.matmul %196, %14, %cst_51 {dimension_numbers = #tpu.dot_dimension_numbers<[1], [0], [0], [1], [0, 0, 1, 1], [], []>} : vector<8x32xbf16>, vector<32x128xbf16>, vector<8x128xf32> -> vector<8x128xf32>
    %198 = arith.addf %195, %197 : vector<8x128xf32>
    %199 = vector.extract_strided_slice %198 {offsets = [0, 0], sizes = [8, 96], strides = [1, 1]} : vector<8x128xf32> to vector<8x96xf32>
    %200 = arith.negf %199 : vector<8x96xf32>
    %201 = math.exp %200 : vector<8x96xf32>
    %cst_52 = arith.constant 1.000000e+00 : f32
    %202 = vector.broadcast %cst_52 : f32 to vector<8x96xf32>
    %203 = arith.addf %202, %201 : vector<8x96xf32>
    %204 = arith.divf %202, %203 : vector<8x96xf32>
    %205 = vector.extract_strided_slice %198 {offsets = [0, 96], sizes = [8, 32], strides = [1, 1]} : vector<8x128xf32> to vector<8x32xf32>
    %206 = math.tanh %205 : vector<8x32xf32>
    %207 = vector.extract_strided_slice %204 {offsets = [0, 0], sizes = [8, 32], strides = [1, 1]} : vector<8x96xf32> to vector<8x32xf32>
    %208 = vector.extract_strided_slice %204 {offsets = [0, 32], sizes = [8, 32], strides = [1, 1]} : vector<8x96xf32> to vector<8x32xf32>
    %209 = vector.extract_strided_slice %204 {offsets = [0, 64], sizes = [8, 32], strides = [1, 1]} : vector<8x96xf32> to vector<8x32xf32>
    %210 = arith.mulf %208, %187 : vector<8x32xf32>
    %211 = arith.mulf %207, %206 : vector<8x32xf32>
    %212 = arith.addf %210, %211 : vector<8x32xf32>
    %213 = math.tanh %212 : vector<8x32xf32>
    %214 = arith.mulf %209, %213 : vector<8x32xf32>
    %215 = arith.index_cast %193 : i32 to index
    %c0_53 = arith.constant 0 : index
    %216 = vector.load %arg13[%215, %c0_53] : memref<64x32xf32, #tpu.memory_space<vmem>>, vector<8x32xf32>
    tpu.vector_store %arg13[%215, %c0_53], %214 {strides = array<i32>} : memref<64x32xf32, #tpu.memory_space<vmem>>, vector<8x32xf32>,
    %c8_i32_54 = arith.constant 8 : i32
    %c0_55 = arith.constant 0 : index
    %c0_56 = arith.constant 0 : index
    %217 = vector.load %arg10[%c0_55, %c0_56] : memref<8x32xf32, #tpu.memory_space<vmem>>, vector<8x32xf32>
    tpu.vector_store %arg10[%c0_55, %c0_56], %214 {strides = array<i32>} : memref<8x32xf32, #tpu.memory_space<vmem>>, vector<8x32xf32>,
    %c0_57 = arith.constant 0 : index
    %c0_58 = arith.constant 0 : index
    %218 = vector.load %arg11[%c0_57, %c0_58] : memref<8x32xf32, #tpu.memory_space<vmem>>, vector<8x32xf32>
    tpu.vector_store %arg11[%c0_57, %c0_58], %212 {strides = array<i32>} : memref<8x32xf32, #tpu.memory_space<vmem>>, vector<8x32xf32>,
    %c0_59 = arith.constant 0 : index
    %c0_60 = arith.constant 0 : index
    %219 = vector.load %arg13[%c0_59, %c0_60] : memref<64x32xf32, #tpu.memory_space<vmem>>, vector<64x32xf32>
    %220 = arith.truncf %219 : vector<64x32xf32> to vector<64x32xbf16>
    %c0_61 = arith.constant 0 : index
    %c0_62 = arith.constant 0 : index
    %221 = vector.load %arg5[%c0_61, %c0_62] : memref<32x128xbf16, #tpu.memory_space<vmem>>, vector<32x128xbf16>
    %cst_63 = arith.constant dense<0.000000e+00> : vector<64x128xf32>
    %222 = tpu.matmul %220, %221, %cst_63 {dimension_numbers = #tpu.dot_dimension_numbers<[1], [0], [0], [1], [0, 0, 1, 1], [], []>} : vector<64x32xbf16>, vector<32x128xbf16>, vector<64x128xf32> -> vector<64x128xf32>
    %c0_64 = arith.constant 0 : index
    %c0_65 = arith.constant 0 : index
    %223 = vector.load %arg6[%c0_64, %c0_65] : memref<1x128xf32, #tpu.memory_space<vmem>>, vector<1x128xf32>
    %224 = vector.broadcast %223 : vector<1x128xf32> to vector<64x128xf32>
    %225 = arith.addf %222, %224 : vector<64x128xf32>
    %c0_66 = arith.constant 0 : index
    %c0_67 = arith.constant 0 : index
    %226 = vector.load %arg9[%c0_66, %c0_67] : memref<64x128xf32, #tpu.memory_space<vmem>>, vector<64x128xf32>
    tpu.vector_store %arg9[%c0_66, %c0_67], %225 {strides = array<i32>} : memref<64x128xf32, #tpu.memory_space<vmem>>, vector<64x128xf32>,
    return
  }
  func.func @transform_0(%arg0: i32) -> (i32, i32) {
    %c0_i32 = arith.constant 0 : i32
    %c0_i32_0 = arith.constant 0 : i32
    %c0_i32_1 = arith.constant 0 : i32
    return %c0_i32, %c0_i32_0 : i32, i32
  }
  func.func @transform_1(%arg0: i32) -> (i32, i32) {
    %c0_i32 = arith.constant 0 : i32
    %c0_i32_0 = arith.constant 0 : i32
    %c0_i32_1 = arith.constant 0 : i32
    return %c0_i32, %c0_i32_0 : i32, i32
  }
  func.func @transform_2(%arg0: i32) -> (i32, i32) {
    %c0_i32 = arith.constant 0 : i32
    %c0_i32_0 = arith.constant 0 : i32
    %c0_i32_1 = arith.constant 0 : i32
    return %c0_i32, %c0_i32_0 : i32, i32
  }
  func.func @transform_3(%arg0: i32) -> (i32, i32) {
    %c0_i32 = arith.constant 0 : i32
    %c0_i32_0 = arith.constant 0 : i32
    %c0_i32_1 = arith.constant 0 : i32
    return %c0_i32, %c0_i32_0 : i32, i32
  }
  func.func @transform_4(%arg0: i32) -> (i32, i32) {
    %c0_i32 = arith.constant 0 : i32
    %c0_i32_0 = arith.constant 0 : i32
    %c0_i32_1 = arith.constant 0 : i32
    return %c0_i32, %c0_i32_0 : i32, i32
  }
  func.func @transform_5(%arg0: i32) -> (i32, i32) {
    %c0_i32 = arith.constant 0 : i32
    %c0_i32_0 = arith.constant 0 : i32
    %c0_i32_1 = arith.constant 0 : i32
    return %c0_i32, %c0_i32_0 : i32, i32
  }
  func.func @transform_6(%arg0: i32) -> (i32, i32) {
    %c0_i32 = arith.constant 0 : i32
    %c0_i32_0 = arith.constant 0 : i32
    %c0_i32_1 = arith.constant 0 : i32
    return %c0_i32, %c0_i32_0 : i32, i32
  }
  func.func @transform_7(%arg0: i32) -> (i32, i32) {
    %c0_i32 = arith.constant 0 : i32
    %c0_i32_0 = arith.constant 0 : i32
    %c0_i32_1 = arith.constant 0 : i32
    return %c0_i32, %c0_i32_0 : i32, i32
  }
  func.func @transform_8(%arg0: i32) -> (i32, i32) {
    %c0_i32 = arith.constant 0 : i32
    %c0_i32_0 = arith.constant 0 : i32
    %c0_i32_1 = arith.constant 0 : i32
    return %c0_i32, %c0_i32_0 : i32, i32
  }
  func.func @transform_9(%arg0: i32) -> (i32, i32) {
    %c0_i32 = arith.constant 0 : i32
    %c0_i32_0 = arith.constant 0 : i32
    %c0_i32_1 = arith.constant 0 : i32
    return %c0_i32, %c0_i32_0 : i32, i32
  }
  func.func @transform_10(%arg0: i32) -> (i32, i32) {
    %c0_i32 = arith.constant 0 : i32
    %c0_i32_0 = arith.constant 0 : i32
    %c0_i32_1 = arith.constant 0 : i32
    return %c0_i32, %c0_i32_0 : i32, i32
  }
}

</mosaic_0001>

<llo_original>
// kernel: tpu_custom_call.1
$region0: #{tpu_custom_call.1}
  #allocation0 [shape = 'u32[]', space=smem, size = 0x4, offset = 0x4, fixed_abs, tag = 'smem constant byte address 0x4 - core index']
  #allocation1 [shape = 'u32[72,128]{1,0:T(1,128)}', space=vmem, size = 0x9000, scoped, tag = 'internal scratch']
  #allocation2 [shape = 'f32[64,128]{1,0:T(8,128)}', space=vmem, size = 0x8000, scoped, tag = 'scratch operand']
  #allocation3 [shape = 'f32[64,32]{1,0:T(8,128)}', space=vmem, size = 0x8000, scoped, tag = 'scratch operand']
  %s0 = inlined_call_operand.vmem [shape: s32[64,1], index: 0, kind: input, shape index: {}]
  %s1 = inlined_call_operand.vmem [shape: bf16[32,128], index: 1, kind: input, shape index: {}]
  %s2 = inlined_call_operand.vmem [shape: bf16[32,128], index: 2, kind: input, shape index: {}]
  %s3 = inlined_call_operand.vmem [shape: f32[1,128], index: 3, kind: input, shape index: {}]
  %s4 = inlined_call_operand.vmem [shape: bf16[32,128], index: 4, kind: input, shape index: {}]
  %s5 = inlined_call_operand.vmem [shape: f32[1,128], index: 5, kind: input, shape index: {}]
  %s6 = inlined_call_operand.vmem [shape: f32[8,32], index: 6, kind: input, shape index: {}]
  %s7 = inlined_call_operand.vmem [shape: f32[8,32], index: 7, kind: input, shape index: {}]
  %s8 = inlined_call_operand.hbm [shape: f32[64,128], index: 8, kind: output, shape index: {0}]
  %s9 = inlined_call_operand.hbm [shape: f32[8,32], index: 9, kind: output, shape index: {1}]
  %s10 = inlined_call_operand.hbm [shape: f32[8,32], index: 10, kind: output, shape index: {2}]
  %11 = xla_tuple %s8, %s9, %s10
  %s12 = sld [smem:[#allocation0]]
  $region58: #{tpu_custom_call.1} parent=0
    _
  %s14 = ssub.s32 1, %s12
  %s15 = scalar_select 0, %s14, %s12
  $region1: #{tpu_custom_call.1} parent=0
    #allocation4 [shape = 'u8[32768]{0}', space=vmem, size = 0x8000, scoped, tag = 'output window, operand 0, single buffered']
    #allocation5 [shape = 's32[1]{0}', space=sflag, size = 0x4, scoped, tag = 'scoped memory for tpu_custom_call.1']
    #allocation6 [shape = 'u8[4096]{0}', space=vmem, size = 0x1000, scoped, tag = 'output window, operand 1, single buffered']
    #allocation7 [shape = 's32[1]{0}', space=sflag, size = 0x4, scoped, tag = 'scoped memory for tpu_custom_call.1']
    #allocation8 [shape = 'u8[4096]{0}', space=vmem, size = 0x1000, scoped, tag = 'output window, operand 2, single buffered']
    %16 = vsyncpa [#allocation5], 0
    %17 = vsyncpa [#allocation7], 0
    // Predicated region
    $region2: #{tpu_custom_call.1} parent=1 // pred_check
      _
    $region3: #{tpu_custom_call.1} parent=1 // pred_check_branch
      %19 = sbr.rel (0) target = $region5
    $region4: #{tpu_custom_call.1} parent=1 // pred_region
      _
    $region5: #{tpu_custom_call.1} parent=1 // pred_fallthru
      _
    // Predicated region
    $region6: #{tpu_custom_call.1} parent=1 // pred_check
      _
    $region7: #{tpu_custom_call.1} parent=1 // pred_check_branch
      %21 = sbr.rel (0) target = $region9
    $region8: #{tpu_custom_call.1} parent=1 // pred_region
      _
    $region9: #{tpu_custom_call.1} parent=1 // pred_fallthru
      _
    // Predicated region
    $region10: #{tpu_custom_call.1} parent=1 // pred_check
      _
    $region11: #{tpu_custom_call.1} parent=1 // pred_check_branch
      %23 = sbr.rel (0) target = $region13
    $region12: #{tpu_custom_call.1} parent=1 // pred_region
      _
    $region13: #{tpu_custom_call.1} parent=1 // pred_fallthru
      _
    // Predicated region
    $region14: #{tpu_custom_call.1} parent=1 // pred_check
      _
    $region15: #{tpu_custom_call.1} parent=1 // pred_check_branch
      %25 = sbr.rel (0) target = $region17
    $region16: #{tpu_custom_call.1} parent=1 // pred_region
      _
    $region17: #{tpu_custom_call.1} parent=1 // pred_fallthru
      _
    // Predicated region
    $region18: #{tpu_custom_call.1} parent=1 // pred_check
      _
    $region19: #{tpu_custom_call.1} parent=1 // pred_check_branch
      %27 = sbr.rel (0) target = $region21
    $region20: #{tpu_custom_call.1} parent=1 // pred_region
      _
    $region21: #{tpu_custom_call.1} parent=1 // pred_fallthru
      _
    // Predicated region
    $region22: #{tpu_custom_call.1} parent=1 // pred_check
      _
    $region23: #{tpu_custom_call.1} parent=1 // pred_check_branch
      %29 = sbr.rel (0) target = $region25
    $region24: #{tpu_custom_call.1} parent=1 // pred_region
      _
    $region25: #{tpu_custom_call.1} parent=1 // pred_fallthru
      _
    // Predicated region
    $region26: #{tpu_custom_call.1} parent=1 // pred_check
      _
    $region27: #{tpu_custom_call.1} parent=1 // pred_check_branch
      %31 = sbr.rel (0) target = $region29
    $region28: #{tpu_custom_call.1} parent=1 // pred_region
      _
    $region29: #{tpu_custom_call.1} parent=1 // pred_fallthru
      _
    // Predicated region
    $region30: #{tpu_custom_call.1} parent=1 // pred_check
      _
    $region31: #{tpu_custom_call.1} parent=1 // pred_check_branch
      %33 = sbr.rel (0) target = $region33
    $region32: #{tpu_custom_call.1} parent=1 // pred_region
      _
    $region33: #{tpu_custom_call.1} parent=1 // pred_fallthru
      _
    %v35 = vld [vmem:[%s0] sm:$0xff]
    %v36 = vld [vmem:[%s0 + $0x8] sm:$0xff]
    %v37 = vld [vmem:[%s0 + $0x10] sm:$0xff]
    %v38 = vld [vmem:[%s0 + $0x18] sm:$0xff]
    %v39 = vld [vmem:[%s0 + $0x20] sm:$0xff]
    %v40 = vld [vmem:[%s0 + $0x28] sm:$0xff]
    %v41 = vld [vmem:[%s0 + $0x30] sm:$0xff]
    %v42 = vld [vmem:[%s0 + $0x38] sm:$0xff]
    %v43 = vlaneseq
    %v44 = vand.u32 %v43, 127
    %45 = vset.pattern.permute.xlu0 0
    %46 = vperm.xlu0 %45, %v35
    %v47 = vpop.permute.xlu0 %46
    %48 = vset.pattern.permute.xlu0 0
    %49 = vperm.xlu0 %48, %v36
    %v50 = vpop.permute.xlu0 %49
    %51 = vset.pattern.permute.xlu0 0
    %52 = vperm.xlu0 %51, %v37
    %v53 = vpop.permute.xlu0 %52
    %54 = vset.pattern.permute.xlu0 0
    %55 = vperm.xlu0 %54, %v38
    %v56 = vpop.permute.xlu0 %55
    %57 = vset.pattern.permute.xlu0 0
    %58 = vperm.xlu0 %57, %v39
    %v59 = vpop.permute.xlu0 %58
    %60 = vset.pattern.permute.xlu0 0
    %61 = vperm.xlu0 %60, %v40
    %v62 = vpop.permute.xlu0 %61
    %63 = vset.pattern.permute.xlu0 0
    %64 = vperm.xlu0 %63, %v41
    %v65 = vpop.permute.xlu0 %64
    %66 = vset.pattern.permute.xlu0 0
    %67 = vperm.xlu0 %66, %v42
    %v68 = vpop.permute.xlu0 %67
    %vm69 = vcmp.eq.s32.totalorder %v44, %v47
    %vm70 = vcmp.eq.s32.totalorder %v44, %v50
    %vm71 = vcmp.eq.s32.totalorder %v44, %v53
    %vm72 = vcmp.eq.s32.totalorder %v44, %v56
    %vm73 = vcmp.eq.s32.totalorder %v44, %v59
    %vm74 = vcmp.eq.s32.totalorder %v44, %v62
    %vm75 = vcmp.eq.s32.totalorder %v44, %v65
    %vm76 = vcmp.eq.s32.totalorder %v44, %v68
    %v77 = vsel %vm69, 1.0, 0.0
    %v78 = vsel %vm70, 1.0, 0.0
    %v79 = vsel %vm71, 1.0, 0.0
    %v80 = vsel %vm72, 1.0, 0.0
    %v81 = vsel %vm73, 1.0, 0.0
    %v82 = vsel %vm74, 1.0, 0.0
    %v83 = vsel %vm75, 1.0, 0.0
    %v84 = vsel %vm76, 1.0, 0.0
    %v85 = vpack.c.bf16 %v78, %v77
    %v86 = vpack.c.bf16 %v80, %v79
    %v87 = vpack.c.bf16 %v82, %v81
    %v88 = vpack.c.bf16 %v84, %v83
    %v89 = vld [vmem:[%s1] sm:$0xf]
    %v90 = vld [vmem:[%s1 + $0x4] sm:$0xf]
    %v91 = vld [vmem:[%s1 + $0x8] sm:$0xf]
    %v92 = vld [vmem:[%s1 + $0xc] sm:$0xf]
    %v93 = vld [vmem:[%s3] sm:$0x1]
    %v95 = vperm.slane %v93, 0
    %v101 = vunpack.c.l.b16 %v89
    %v102 = vunpack.c.l.b16 %v90
    %v103 = vunpack.c.l.b16 %v91
    %v104 = vunpack.c.l.b16 %v92
    %v105 = vpack.c.b16 %v102, %v101
    %v106 = vpack.c.b16 %v104, %v103
    %vm109 = vcmask 261120
    %v111 = vsel %vm109, %v85, 0
    %v114 = vsel %vm109, %v86, 0
    %v117 = vsel %vm109, %v87, 0
    %v120 = vsel %vm109, %v88, 0
    %122 = vmatpush.bf16.msra.mxu0 0
    %123 = vmatpush.bf16.msra.mxu0 0
    %124 = vmatpush.bf16.msra.mxu0 0
    %125 = vmatpush.bf16.msra.mxu0 0
    %126 = vmatpush.bf16.msra.mxu0 0
    %127 = vmatpush.bf16.msra.mxu0 0
    %128 = vmatpush.bf16.msra.mxu0 %v106
    %129 = vmatpush.bf16.msra.mxu0 %v105
    %130 = vmatmul.bf16.gmra.mxu0 %v111
    %v131 = vpop.f32.mrf.mxu0
    %v132 = vadd.f32 %v95, %v131
    %v133 = vpop.f32.mrf.mxu0
    %v134 = vadd.f32 %v95, %v133
    %135 = vmatmul.bf16.gmra.mxu0 %v114
    %v136 = vpop.f32.mrf.mxu0
    %v137 = vadd.f32 %v95, %v136
    %v138 = vpop.f32.mrf.mxu0
    %v139 = vadd.f32 %v95, %v138
    %140 = vmatmul.bf16.gmra.mxu0 %v117
    %v141 = vpop.f32.mrf.mxu0
    %v142 = vadd.f32 %v95, %v141
    %v143 = vpop.f32.mrf.mxu0
    %v144 = vadd.f32 %v95, %v143
    %145 = vmatmul.bf16.gmra.mxu0 %v120
    %v146 = vpop.f32.mrf.mxu0
    %v147 = vadd.f32 %v95, %v146
    %v148 = vpop.f32.mrf.mxu0
    %v149 = vadd.f32 %v95, %v148
    %150 = vdwg.mxu0
    %151 = vst [vmem:[#allocation2] sm:$0xff] %v132
    %152 = vst [vmem:[#allocation2 + $0x8] sm:$0xff] %v134
    %153 = vst [vmem:[#allocation2 + $0x10] sm:$0xff] %v137
    %154 = vst [vmem:[#allocation2 + $0x18] sm:$0xff] %v139
    %155 = vst [vmem:[#allocation2 + $0x20] sm:$0xff] %v142
    %156 = vst [vmem:[#allocation2 + $0x28] sm:$0xff] %v144
    %157 = vst [vmem:[#allocation2 + $0x30] sm:$0xff] %v147
    %158 = vst [vmem:[#allocation2 + $0x38] sm:$0xff] %v149
    %v159 = vld [vmem:[%s2] sm:$0xf]
    %v160 = vld [vmem:[%s2 + $0x4] sm:$0xf]
    %v161 = vld [vmem:[%s2 + $0x8] sm:$0xf]
    %v162 = vld [vmem:[%s2 + $0xc] sm:$0xf]
    %v163 = vld [vmem:[%s6] sm:$0xff]
    %v164 = vld [vmem:[%s7] sm:$0xff]
    %v165 = vld [vmem:[#allocation2] sm:$0xff]
    %v166 = vpack.c.bf16 %v163, %v163
    %v171 = vunpack.c.l.b16 %v159
    %v172 = vunpack.c.l.b16 %v160
    %v173 = vunpack.c.l.b16 %v161
    %v174 = vunpack.c.l.b16 %v162
    %v175 = vpack.c.b16 %v172, %v171
    %v176 = vpack.c.b16 %v174, %v173
    %v180 = vsel %vm109, %v166, 0
    %182 = vmatpush.bf16.msra.mxu0 0
    %183 = vmatpush.bf16.msra.mxu0 0
    %184 = vmatpush.bf16.msra.mxu0 0
    %185 = vmatpush.bf16.msra.mxu0 0
    %186 = vmatpush.bf16.msra.mxu0 0
    %187 = vmatpush.bf16.msra.mxu0 0
    %188 = vmatpush.bf16.msra.mxu0 %v176
    %189 = vmatpush.bf16.msra.mxu0 %v175
    %190 = vmatmul.bf16.gmra.mxu0 %v180
    %v191 = vpop.f32.mrf.mxu0
    %v192 = vadd.f32 0.0, %v191
    %v193 = vpop.f32.mrf.mxu0
    %194 = vdwg.mxu0
    %v195 = vadd.f32 %v165, %v192
    %v196 = vxor.u32 %v195, 2147483648
    %v197 = vmul.f32 %v196, 1.442695
    %v198 = vpow.pop %v197
    %v199 = vadd.f32 %v198, 1.0
    %v200 = vrcp.pop %v199
    %v201 = vmul.f32 %v199, %v200
    %v202 = vsub.f32 1.0, %v201
    %v203 = vmul.f32 %v200, %v202
    %v204 = vadd.f32 %v200, %v203
    %vm205 = vweird.f32 %v199
    %vm206 = vweird.f32 %v200
    %vm207 = vmor %vm205, %vm206
    %v208 = vsel %vm207, %v200, %v204
    %v209 = vand.u32 2147483647, %v199
    %vm210 = vcmp.eq.f32.partialorder %v209, 8.507059e+37
    %v211 = vand.u32 %v199, 2147483648
    %v212 = vor.u32 1.1754944e-38, %v211
    %v213 = vsel %vm210, %v212, %v208
    %v214 = vmul.f32 1.0, %v213
    %v215 = vtanh.pop %v195
    %217 = vrot.lane.b32.xlu0 %v164, 32
    %v218 = vpop.permute.xlu0 %217
    %v220 = vmul.f32 %v214, %v218
    %222 = vrot.lane.b32.xlu0 %v215, 32
    %v223 = vpop.permute.xlu0 %222
    %v225 = vmul.f32 %v214, %v223
    %227 = vrot.lane.b32.xlu0 %v225, 32
    %v228 = vpop.permute.xlu0 %227
    %v230 = vadd.f32 %v220, %v228
    %v231 = vtanh.pop %v230
    %233 = vrot.lane.b32.xlu0 %v231, 32
    %v234 = vpop.permute.xlu0 %233
    %v236 = vmul.f32 %v214, %v234
    %238 = vrot.lane.b32.xlu0 %v236, 64
    %v239 = vpop.permute.xlu0 %238
    %241 = vst.msk [vmem:[#allocation3] sm:$0xff] %vm109, %v239
    %s242 = scalar_lea.vmem [#allocation2], 8
    %v243 = vld [vmem:[%s242] sm:$0xff]
    %v244 = vpack.c.bf16 %v236, %v236
    %246 = vrot.lane.b32.xlu0 %v244, 64
    %v247 = vpop.permute.xlu0 %246
    %v249 = vsel %vm109, %v247, 0
    %251 = vmatpush.bf16.msra.mxu0 0
    %252 = vmatpush.bf16.msra.mxu0 0
    %253 = vmatpush.bf16.msra.mxu0 0
    %254 = vmatpush.bf16.msra.mxu0 0
    %255 = vmatpush.bf16.msra.mxu0 0
    %256 = vmatpush.bf16.msra.mxu0 0
    %257 = vmatpush.bf16.msra.mxu0 %v176
    %258 = vmatpush.bf16.msra.mxu0 %v175
    %259 = vmatmul.bf16.gmra.mxu0 %v249
    %v260 = vpop.f32.mrf.mxu0
    %v261 = vadd.f32 0.0, %v260
    %v262 = vpop.f32.mrf.mxu0
    %263 = vdwg.mxu0
    %v264 = vadd.f32 %v243, %v261
    %v265 = vxor.u32 %v264, 2147483648
    %v266 = vmul.f32 %v265, 1.442695
    %v267 = vpow.pop %v266
    %v268 = vadd.f32 %v267, 1.0
    %v269 = vrcp.pop %v268
    %v270 = vmul.f32 %v268, %v269
    %v271 = vsub.f32 1.0, %v270
    %v272 = vmul.f32 %v269, %v271
    %v273 = vadd.f32 %v269, %v272
    %vm274 = vweird.f32 %v268
    %vm275 = vweird.f32 %v269
    %vm276 = vmor %vm274, %vm275
    %v277 = vsel %vm276, %v269, %v273
    %v278 = vand.u32 2147483647, %v268
    %vm279 = vcmp.eq.f32.partialorder %v278, 8.507059e+37
    %v280 = vand.u32 %v268, 2147483648
    %v281 = vor.u32 1.1754944e-38, %v280
    %v282 = vsel %vm279, %v281, %v277
    %v283 = vmul.f32 1.0, %v282
    %v284 = vtanh.pop %v264
    %v285 = vmul.f32 %v283, %v230
    %287 = vrot.lane.b32.xlu0 %v284, 32
    %v288 = vpop.permute.xlu0 %287
    %v290 = vmul.f32 %v283, %v288
    %292 = vrot.lane.b32.xlu0 %v290, 32
    %v293 = vpop.permute.xlu0 %292
    %v295 = vadd.f32 %v285, %v293
    %v296 = vtanh.pop %v295
    %298 = vrot.lane.b32.xlu0 %v296, 32
    %v299 = vpop.permute.xlu0 %298
    %v301 = vmul.f32 %v283, %v299
    %303 = vrot.lane.b32.xlu0 %v301, 64
    %v304 = vpop.permute.xlu0 %303
    %s306 = scalar_lea.vmem [#allocation3], 8
    %307 = vst.msk [vmem:[%s306] sm:$0xff] %vm109, %v304
    %s308 = scalar_lea.vmem [#allocation2], 16
    %v309 = vld [vmem:[%s308] sm:$0xff]
    %v310 = vpack.c.bf16 %v301, %v301
    %312 = vrot.lane.b32.xlu0 %v310, 64
    %v313 = vpop.permute.xlu0 %312
    %v315 = vsel %vm109, %v313, 0
    %317 = vmatpush.bf16.msra.mxu0 0
    %318 = vmatpush.bf16.msra.mxu0 0
    %319 = vmatpush.bf16.msra.mxu0 0
    %320 = vmatpush.bf16.msra.mxu0 0
    %321 = vmatpush.bf16.msra.mxu0 0
    %322 = vmatpush.bf16.msra.mxu0 0
    %323 = vmatpush.bf16.msra.mxu0 %v176
    %324 = vmatpush.bf16.msra.mxu0 %v175
    %325 = vmatmul.bf16.gmra.mxu0 %v315
    %v326 = vpop.f32.mrf.mxu0
    %v327 = vadd.f32 0.0, %v326
    %v328 = vpop.f32.mrf.mxu0
    %329 = vdwg.mxu0
    %v330 = vadd.f32 %v309, %v327
    %v331 = vxor.u32 %v330, 2147483648
    %v332 = vmul.f32 %v331, 1.442695
    %v333 = vpow.pop %v332
    %v334 = vadd.f32 %v333, 1.0
    %v335 = vrcp.pop %v334
    %v336 = vmul.f32 %v334, %v335
    %v337 = vsub.f32 1.0, %v336
    %v338 = vmul.f32 %v335, %v337
    %v339 = vadd.f32 %v335, %v338
    %vm340 = vweird.f32 %v334
    %vm341 = vweird.f32 %v335
    %vm342 = vmor %vm340, %vm341
    %v343 = vsel %vm342, %v335, %v339
    %v344 = vand.u32 2147483647, %v334
    %vm345 = vcmp.eq.f32.partialorder %v344, 8.507059e+37
    %v346 = vand.u32 %v334, 2147483648
    %v347 = vor.u32 1.1754944e-38, %v346
    %v348 = vsel %vm345, %v347, %v343
    %v349 = vmul.f32 1.0, %v348
    %v350 = vtanh.pop %v330
    %v351 = vmul.f32 %v349, %v295
    %353 = vrot.lane.b32.xlu0 %v350, 32
    %v354 = vpop.permute.xlu0 %353
    %v356 = vmul.f32 %v349, %v354
    %358 = vrot.lane.b32.xlu0 %v356, 32
    %v359 = vpop.permute.xlu0 %358
    %v361 = vadd.f32 %v351, %v359
    %v362 = vtanh.pop %v361
    %364 = vrot.lane.b32.xlu0 %v362, 32
    %v365 = vpop.permute.xlu0 %364
    %v367 = vmul.f32 %v349, %v365
    %369 = vrot.lane.b32.xlu0 %v367, 64
    %v370 = vpop.permute.xlu0 %369
    %s372 = scalar_lea.vmem [#allocation3], 16
    %373 = vst.msk [vmem:[%s372] sm:$0xff] %vm109, %v370
    %s374 = scalar_lea.vmem [#allocation2], 24
    %v375 = vld [vmem:[%s374] sm:$0xff]
    %v376 = vpack.c.bf16 %v367, %v367
    %378 = vrot.lane.b32.xlu0 %v376, 64
    %v379 = vpop.permute.xlu0 %378
    %v381 = vsel %vm109, %v379, 0
    %383 = vmatpush.bf16.msra.mxu0 0
    %384 = vmatpush.bf16.msra.mxu0 0
    %385 = vmatpush.bf16.msra.mxu0 0
    %386 = vmatpush.bf16.msra.mxu0 0
    %387 = vmatpush.bf16.msra.mxu0 0
    %388 = vmatpush.bf16.msra.mxu0 0
    %389 = vmatpush.bf16.msra.mxu0 %v176
    %390 = vmatpush.bf16.msra.mxu0 %v175
    %391 = vmatmul.bf16.gmra.mxu0 %v381
    %v392 = vpop.f32.mrf.mxu0
    %v393 = vadd.f32 0.0, %v392
    %v394 = vpop.f32.mrf.mxu0
    %395 = vdwg.mxu0
    %v396 = vadd.f32 %v375, %v393
    %v397 = vxor.u32 %v396, 2147483648
    %v398 = vmul.f32 %v397, 1.442695
    %v399 = vpow.pop %v398
    %v400 = vadd.f32 %v399, 1.0
    %v401 = vrcp.pop %v400
    %v402 = vmul.f32 %v400, %v401
    %v403 = vsub.f32 1.0, %v402
    %v404 = vmul.f32 %v401, %v403
    %v405 = vadd.f32 %v401, %v404
    %vm406 = vweird.f32 %v400
    %vm407 = vweird.f32 %v401
    %vm408 = vmor %vm406, %vm407
    %v409 = vsel %vm408, %v401, %v405
    %v410 = vand.u32 2147483647, %v400
    %vm411 = vcmp.eq.f32.partialorder %v410, 8.507059e+37
    %v412 = vand.u32 %v400, 2147483648
    %v413 = vor.u32 1.1754944e-38, %v412
    %v414 = vsel %vm411, %v413, %v409
    %v415 = vmul.f32 1.0, %v414
    %v416 = vtanh.pop %v396
    %v417 = vmul.f32 %v415, %v361
    %419 = vrot.lane.b32.xlu0 %v416, 32
    %v420 = vpop.permute.xlu0 %419
    %v422 = vmul.f32 %v415, %v420
    %424 = vrot.lane.b32.xlu0 %v422, 32
    %v425 = vpop.permute.xlu0 %424
    %v427 = vadd.f32 %v417, %v425
    %v428 = vtanh.pop %v427
    %430 = vrot.lane.b32.xlu0 %v428, 32
    %v431 = vpop.permute.xlu0 %430
    %v433 = vmul.f32 %v415, %v431
    %435 = vrot.lane.b32.xlu0 %v433, 64
    %v436 = vpop.permute.xlu0 %435
    %s438 = scalar_lea.vmem [#allocation3], 24
    %439 = vst.msk [vmem:[%s438] sm:$0xff] %vm109, %v436
    %s440 = scalar_lea.vmem [#allocation2], 32
    %v441 = vld [vmem:[%s440] sm:$0xff]
    %v442 = vpack.c.bf16 %v433, %v433
    %444 = vrot.lane.b32.xlu0 %v442, 64
    %v445 = vpop.permute.xlu0 %444
    %v447 = vsel %vm109, %v445, 0
    %449 = vmatpush.bf16.msra.mxu0 0
    %450 = vmatpush.bf16.msra.mxu0 0
    %451 = vmatpush.bf16.msra.mxu0 0
    %452 = vmatpush.bf16.msra.mxu0 0
    %453 = vmatpush.bf16.msra.mxu0 0
    %454 = vmatpush.bf16.msra.mxu0 0
    %455 = vmatpush.bf16.msra.mxu0 %v176
    %456 = vmatpush.bf16.msra.mxu0 %v175
    %457 = vmatmul.bf16.gmra.mxu0 %v447
    %v458 = vpop.f32.mrf.mxu0
    %v459 = vadd.f32 0.0, %v458
    %v460 = vpop.f32.mrf.mxu0
    %461 = vdwg.mxu0
    %v462 = vadd.f32 %v441, %v459
    %v463 = vxor.u32 %v462, 2147483648
    %v464 = vmul.f32 %v463, 1.442695
    %v465 = vpow.pop %v464
    %v466 = vadd.f32 %v465, 1.0
    %v467 = vrcp.pop %v466
    %v468 = vmul.f32 %v466, %v467
    %v469 = vsub.f32 1.0, %v468
    %v470 = vmul.f32 %v467, %v469
    %v471 = vadd.f32 %v467, %v470
    %vm472 = vweird.f32 %v466
    %vm473 = vweird.f32 %v467
    %vm474 = vmor %vm472, %vm473
    %v475 = vsel %vm474, %v467, %v471
    %v476 = vand.u32 2147483647, %v466
    %vm477 = vcmp.eq.f32.partialorder %v476, 8.507059e+37
    %v478 = vand.u32 %v466, 2147483648
    %v479 = vor.u32 1.1754944e-38, %v478
    %v480 = vsel %vm477, %v479, %v475
    %v481 = vmul.f32 1.0, %v480
    %v482 = vtanh.pop %v462
    %v483 = vmul.f32 %v481, %v427
    %485 = vrot.lane.b32.xlu0 %v482, 32
    %v486 = vpop.permute.xlu0 %485
    %v488 = vmul.f32 %v481, %v486
    %490 = vrot.lane.b32.xlu0 %v488, 32
    %v491 = vpop.permute.xlu0 %490
    %v493 = vadd.f32 %v483, %v491
    %v494 = vtanh.pop %v493
    %496 = vrot.lane.b32.xlu0 %v494, 32
    %v497 = vpop.permute.xlu0 %496
    %v499 = vmul.f32 %v481, %v497
    %501 = vrot.lane.b32.xlu0 %v499, 64
    %v502 = vpop.permute.xlu0 %501
    %s504 = scalar_lea.vmem [#allocation3], 32
    %505 = vst.msk [vmem:[%s504] sm:$0xff] %vm109, %v502
    %s506 = scalar_lea.vmem [#allocation2], 40
    %v507 = vld [vmem:[%s506] sm:$0xff]
    %v508 = vpack.c.bf16 %v499, %v499
    %510 = vrot.lane.b32.xlu0 %v508, 64
    %v511 = vpop.permute.xlu0 %510
    %v513 = vsel %vm109, %v511, 0
    %515 = vmatpush.bf16.msra.mxu0 0
    %516 = vmatpush.bf16.msra.mxu0 0
    %517 = vmatpush.bf16.msra.mxu0 0
    %518 = vmatpush.bf16.msra.mxu0 0
    %519 = vmatpush.bf16.msra.mxu0 0
    %520 = vmatpush.bf16.msra.mxu0 0
    %521 = vmatpush.bf16.msra.mxu0 %v176
    %522 = vmatpush.bf16.msra.mxu0 %v175
    %523 = vmatmul.bf16.gmra.mxu0 %v513
    %v524 = vpop.f32.mrf.mxu0
    %v525 = vadd.f32 0.0, %v524
    %v526 = vpop.f32.mrf.mxu0
    %527 = vdwg.mxu0
    %v528 = vadd.f32 %v507, %v525
    %v529 = vxor.u32 %v528, 2147483648
    %v530 = vmul.f32 %v529, 1.442695
    %v531 = vpow.pop %v530
    %v532 = vadd.f32 %v531, 1.0
    %v533 = vrcp.pop %v532
    %v534 = vmul.f32 %v532, %v533
    %v535 = vsub.f32 1.0, %v534
    %v536 = vmul.f32 %v533, %v535
    %v537 = vadd.f32 %v533, %v536
    %vm538 = vweird.f32 %v532
    %vm539 = vweird.f32 %v533
    %vm540 = vmor %vm538, %vm539
    %v541 = vsel %vm540, %v533, %v537
    %v542 = vand.u32 2147483647, %v532
    %vm543 = vcmp.eq.f32.partialorder %v542, 8.507059e+37
    %v544 = vand.u32 %v532, 2147483648
    %v545 = vor.u32 1.1754944e-38, %v544
    %v546 = vsel %vm543, %v545, %v541
    %v547 = vmul.f32 1.0, %v546
    %v548 = vtanh.pop %v528
    %v549 = vmul.f32 %v547, %v493
    %551 = vrot.lane.b32.xlu0 %v548, 32
    %v552 = vpop.permute.xlu0 %551
    %v554 = vmul.f32 %v547, %v552
    %556 = vrot.lane.b32.xlu0 %v554, 32
    %v557 = vpop.permute.xlu0 %556
    %v559 = vadd.f32 %v549, %v557
    %v560 = vtanh.pop %v559
    %562 = vrot.lane.b32.xlu0 %v560, 32
    %v563 = vpop.permute.xlu0 %562
    %v565 = vmul.f32 %v547, %v563
    %567 = vrot.lane.b32.xlu0 %v565, 64
    %v568 = vpop.permute.xlu0 %567
    %s570 = scalar_lea.vmem [#allocation3], 40
    %571 = vst.msk [vmem:[%s570] sm:$0xff] %vm109, %v568
    %s572 = scalar_lea.vmem [#allocation2], 48
    %v573 = vld [vmem:[%s572] sm:$0xff]
    %v574 = vpack.c.bf16 %v565, %v565
    %576 = vrot.lane.b32.xlu0 %v574, 64
    %v577 = vpop.permute.xlu0 %576
    %v579 = vsel %vm109, %v577, 0
    %581 = vmatpush.bf16.msra.mxu0 0
    %582 = vmatpush.bf16.msra.mxu0 0
    %583 = vmatpush.bf16.msra.mxu0 0
    %584 = vmatpush.bf16.msra.mxu0 0
    %585 = vmatpush.bf16.msra.mxu0 0
    %586 = vmatpush.bf16.msra.mxu0 0
    %587 = vmatpush.bf16.msra.mxu0 %v176
    %588 = vmatpush.bf16.msra.mxu0 %v175
    %589 = vmatmul.bf16.gmra.mxu0 %v579
    %v590 = vpop.f32.mrf.mxu0
    %v591 = vadd.f32 0.0, %v590
    %v592 = vpop.f32.mrf.mxu0
    %593 = vdwg.mxu0
    %v594 = vadd.f32 %v573, %v591
    %v595 = vxor.u32 %v594, 2147483648
    %v596 = vmul.f32 %v595, 1.442695
    %v597 = vpow.pop %v596
    %v598 = vadd.f32 %v597, 1.0
    %v599 = vrcp.pop %v598
    %v600 = vmul.f32 %v598, %v599
    %v601 = vsub.f32 1.0, %v600
    %v602 = vmul.f32 %v599, %v601
    %v603 = vadd.f32 %v599, %v602
    %vm604 = vweird.f32 %v598
    %vm605 = vweird.f32 %v599
    %vm606 = vmor %vm604, %vm605
    %v607 = vsel %vm606, %v599, %v603
    %v608 = vand.u32 2147483647, %v598
    %vm609 = vcmp.eq.f32.partialorder %v608, 8.507059e+37
    %v610 = vand.u32 %v598, 2147483648
    %v611 = vor.u32 1.1754944e-38, %v610
    %v612 = vsel %vm609, %v611, %v607
    %v613 = vmul.f32 1.0, %v612
    %v614 = vtanh.pop %v594
    %v615 = vmul.f32 %v613, %v559
    %617 = vrot.lane.b32.xlu0 %v614, 32
    %v618 = vpop.permute.xlu0 %617
    %v620 = vmul.f32 %v613, %v618
    %622 = vrot.lane.b32.xlu0 %v620, 32
    %v623 = vpop.permute.xlu0 %622
    %v625 = vadd.f32 %v615, %v623
    %v626 = vtanh.pop %v625
    %628 = vrot.lane.b32.xlu0 %v626, 32
    %v629 = vpop.permute.xlu0 %628
    %v631 = vmul.f32 %v613, %v629
    %633 = vrot.lane.b32.xlu0 %v631, 64
    %v634 = vpop.permute.xlu0 %633
    %s636 = scalar_lea.vmem [#allocation3], 48
    %637 = vst.msk [vmem:[%s636] sm:$0xff] %vm109, %v634
    %s638 = scalar_lea.vmem [#allocation2], 56
    %v639 = vld [vmem:[%s638] sm:$0xff]
    %v640 = vpack.c.bf16 %v631, %v631
    %642 = vrot.lane.b32.xlu0 %v640, 64
    %v643 = vpop.permute.xlu0 %642
    %v645 = vsel %vm109, %v643, 0
    %647 = vmatpush.bf16.msra.mxu0 0
    %648 = vmatpush.bf16.msra.mxu0 0
    %649 = vmatpush.bf16.msra.mxu0 0
    %650 = vmatpush.bf16.msra.mxu0 0
    %651 = vmatpush.bf16.msra.mxu0 0
    %652 = vmatpush.bf16.msra.mxu0 0
    %653 = vmatpush.bf16.msra.mxu0 %v176
    %654 = vmatpush.bf16.msra.mxu0 %v175
    %655 = vmatmul.bf16.gmra.mxu0 %v645
    %v656 = vpop.f32.mrf.mxu0
    %v657 = vadd.f32 0.0, %v656
    %v658 = vpop.f32.mrf.mxu0
    %659 = vdwg.mxu0
    %v660 = vadd.f32 %v639, %v657
    %v661 = vxor.u32 %v660, 2147483648
    %v662 = vmul.f32 %v661, 1.442695
    %v663 = vpow.pop %v662
    %v664 = vadd.f32 %v663, 1.0
    %v665 = vrcp.pop %v664
    %v666 = vmul.f32 %v664, %v665
    %v667 = vsub.f32 1.0, %v666
    %v668 = vmul.f32 %v665, %v667
    %v669 = vadd.f32 %v665, %v668
    %vm670 = vweird.f32 %v664
    %vm671 = vweird.f32 %v665
    %vm672 = vmor %vm670, %vm671
    %v673 = vsel %vm672, %v665, %v669
    %v674 = vand.u32 2147483647, %v664
    %vm675 = vcmp.eq.f32.partialorder %v674, 8.507059e+37
    %v676 = vand.u32 %v664, 2147483648
    %v677 = vor.u32 1.1754944e-38, %v676
    %v678 = vsel %vm675, %v677, %v673
    %v679 = vmul.f32 1.0, %v678
    %v680 = vtanh.pop %v660
    %v681 = vmul.f32 %v679, %v625
    %683 = vrot.lane.b32.xlu0 %v680, 32
    %v684 = vpop.permute.xlu0 %683
    %v686 = vmul.f32 %v679, %v684
    %688 = vrot.lane.b32.xlu0 %v686, 32
    %v689 = vpop.permute.xlu0 %688
    %v691 = vadd.f32 %v681, %v689
    %v692 = vtanh.pop %v691
    %694 = vrot.lane.b32.xlu0 %v692, 32
    %v695 = vpop.permute.xlu0 %694
    %v697 = vmul.f32 %v679, %v695
    %699 = vrot.lane.b32.xlu0 %v697, 64
    %v700 = vpop.permute.xlu0 %699
    %s702 = scalar_lea.vmem [#allocation3], 56
    %703 = vst.msk [vmem:[%s702] sm:$0xff] %vm109, %v700
    %704 = vst.msk [vmem:[#allocation6] sm:$0xff] %vm109, %v700
    %706 = vrot.lane.b32.xlu0 %v691, 96
    %v707 = vpop.permute.xlu0 %706
    %709 = vst.msk [vmem:[#allocation8] sm:$0xff] %vm109, %v707
    %v710 = vld [vmem:[#allocation3] sm:$0xff]
    %v711 = vld [vmem:[#allocation3 + $0x8] sm:$0xff]
    %v712 = vld [vmem:[#allocation3 + $0x10] sm:$0xff]
    %v713 = vld [vmem:[#allocation3 + $0x18] sm:$0xff]
    %v714 = vld [vmem:[#allocation3 + $0x20] sm:$0xff]
    %v715 = vld [vmem:[#allocation3 + $0x28] sm:$0xff]
    %v716 = vld [vmem:[#allocation3 + $0x30] sm:$0xff]
    %v717 = vld [vmem:[#allocation3 + $0x38] sm:$0xff]
    %v718 = vpack.c.bf16 %v711, %v710
    %v719 = vpack.c.bf16 %v713, %v712
    %v720 = vpack.c.bf16 %v715, %v714
    %v721 = vpack.c.bf16 %v717, %v716
    %v722 = vld [vmem:[%s4] sm:$0xf]
    %v723 = vld [vmem:[%s4 + $0x4] sm:$0xf]
    %v724 = vld [vmem:[%s4 + $0x8] sm:$0xf]
    %v725 = vld [vmem:[%s4 + $0xc] sm:$0xf]
    %v726 = vld [vmem:[%s5] sm:$0x1]
    %v728 = vperm.slane %v726, 0
    %v734 = vunpack.c.l.b16 %v722
    %v735 = vunpack.c.l.b16 %v723
    %v736 = vunpack.c.l.b16 %v724
    %v737 = vunpack.c.l.b16 %v725
    %v738 = vpack.c.b16 %v735, %v734
    %v739 = vpack.c.b16 %v737, %v736
    %v743 = vsel %vm109, %v718, 0
    %v746 = vsel %vm109, %v719, 0
    %v749 = vsel %vm109, %v720, 0
    %v752 = vsel %vm109, %v721, 0
    %754 = vmatpush.bf16.msra.mxu0 0
    %755 = vmatpush.bf16.msra.mxu0 0
    %756 = vmatpush.bf16.msra.mxu0 0
    %757 = vmatpush.bf16.msra.mxu0 0
    %758 = vmatpush.bf16.msra.mxu0 0
    %759 = vmatpush.bf16.msra.mxu0 0
    %760 = vmatpush.bf16.msra.mxu0 %v739
    %761 = vmatpush.bf16.msra.mxu0 %v738
    %762 = vmatmul.bf16.gmra.mxu0 %v743
    %v763 = vpop.f32.mrf.mxu0
    %v764 = vadd.f32 %v728, %v763
    %v765 = vpop.f32.mrf.mxu0
    %v766 = vadd.f32 %v728, %v765
    %767 = vmatmul.bf16.gmra.mxu0 %v746
    %v768 = vpop.f32.mrf.mxu0
    %v769 = vadd.f32 %v728, %v768
    %v770 = vpop.f32.mrf.mxu0
    %v771 = vadd.f32 %v728, %v770
    %772 = vmatmul.bf16.gmra.mxu0 %v749
    %v773 = vpop.f32.mrf.mxu0
    %v774 = vadd.f32 %v728, %v773
    %v775 = vpop.f32.mrf.mxu0
    %v776 = vadd.f32 %v728, %v775
    %777 = vmatmul.bf16.gmra.mxu0 %v752
    %v778 = vpop.f32.mrf.mxu0
    %v779 = vadd.f32 %v728, %v778
    %v780 = vpop.f32.mrf.mxu0
    %v781 = vadd.f32 %v728, %v780
    %782 = vdwg.mxu0
    %783 = vst [vmem:[#allocation4] sm:$0xff] %v764
    %784 = vst [vmem:[#allocation4 + $0x8] sm:$0xff] %v766
    %785 = vst [vmem:[#allocation4 + $0x10] sm:$0xff] %v769
    %786 = vst [vmem:[#allocation4 + $0x18] sm:$0xff] %v771
    %787 = vst [vmem:[#allocation4 + $0x20] sm:$0xff] %v774
    %788 = vst [vmem:[#allocation4 + $0x28] sm:$0xff] %v776
    %789 = vst [vmem:[#allocation4 + $0x30] sm:$0xff] %v779
    %790 = vst [vmem:[#allocation4 + $0x38] sm:$0xff] %v781
    // Predicated region
    $region34: #{tpu_custom_call.1} parent=1 // pred_check
      _
    $region35: #{tpu_custom_call.1} parent=1 // pred_check_branch
      %792 = sbr.rel (0) target = $region37
    $region36: #{tpu_custom_call.1} parent=1 // pred_region
      %794 = vsyncadd [#allocation5], 0
      %s795 = sshll.u32 [#allocation4], 4
      %s796 = int_to_ptr.vmem [resolvable:$true] %s795
      %s797 = sshll.u32 %s8, 4
      %s798 = int_to_ptr.hbm [resolvable:$true] %s797
      %803 = dma.vmem_to_hbm [thread:$0]  %s796, 1024, %s798, [#allocation5], 128, 128, 8
    $region37: #{tpu_custom_call.1} parent=1 // pred_fallthru
      _
    // Predicated region
    $region38: #{tpu_custom_call.1} parent=1 // pred_check
      _
    $region39: #{tpu_custom_call.1} parent=1 // pred_check_branch
      %805 = sbr.rel (0) target = $region41
    $region40: #{tpu_custom_call.1} parent=1 // pred_region
      %807 = vsyncadd [#allocation7], 0
      %s809 = sshll.u32 [#allocation6], 4
      %s810 = int_to_ptr.vmem [resolvable:$true] %s809
      %s811 = sshll.u32 %s9, 4
      %s812 = int_to_ptr.hbm [resolvable:$true] %s811
      %814 = dma.vmem_to_hbm [thread:$0]  %s810, 128, %s812, [#allocation7]
    $region41: #{tpu_custom_call.1} parent=1 // pred_fallthru
      _
    // Predicated region
    $region42: #{tpu_custom_call.1} parent=1 // pred_check
      _
    $region43: #{tpu_custom_call.1} parent=1 // pred_check_branch
      %816 = sbr.rel (0) target = $region45
    $region44: #{tpu_custom_call.1} parent=1 // pred_region
      %818 = vsyncadd [#allocation7], 0
      %s820 = sshll.u32 [#allocation8], 4
      %s821 = int_to_ptr.vmem [resolvable:$true] %s820
      %s822 = sshll.u32 %s10, 4
      %s823 = int_to_ptr.hbm [resolvable:$true] %s822
      %825 = dma.vmem_to_hbm [thread:$0]  %s821, 128, %s823, [#allocation7]
    $region45: #{tpu_custom_call.1} parent=1 // pred_fallthru
      _
    // Predicated region
    $region46: #{tpu_custom_call.1} parent=1 // pred_check
      _
    $region47: #{tpu_custom_call.1} parent=1 // pred_check_branch
      %827 = sbr.rel (0) target = $region49
    $region48: #{tpu_custom_call.1} parent=1 // pred_region
      %829 = dma.done [#allocation5], 1024
    $region49: #{tpu_custom_call.1} parent=1 // pred_fallthru
      _
    // Predicated region
    $region50: #{tpu_custom_call.1} parent=1 // pred_check
      _
    $region51: #{tpu_custom_call.1} parent=1 // pred_check_branch
      %831 = sbr.rel (0) target = $region53
    $region52: #{tpu_custom_call.1} parent=1 // pred_region
      %833 = dma.done [#allocation7], 128
    $region53: #{tpu_custom_call.1} parent=1 // pred_fallthru
      _
    // Predicated region
    $region54: #{tpu_custom_call.1} parent=1 // pred_check
      _
    $region55: #{tpu_custom_call.1} parent=1 // pred_check_branch
      %835 = sbr.rel (0) target = $region57
    $region56: #{tpu_custom_call.1} parent=1 // pred_region
      %837 = dma.done [#allocation7], 128
    $region57: #{tpu_custom_call.1} parent=1 // pred_fallthru
      _
    %838 = vsyncpa [#allocation5], 1
    %839 = vsyncpa [#allocation7], 1

</llo_original>
